<compile_context>
chip_gen: v7x
topology: tpu7x:2x2x1
jax: 0.10.0
libtpu: 0.0.40
codegen_flags: <defaults>
</compile_context>

<pallas_src>
import numpy as np
import jax
import jax.numpy as jnp
from jax.experimental import pallas as pl
from jax.experimental.pallas import tpu as pltpu

_LANE = 128
_MAX_TILE_TETIDX = 512 * 1024     # lanes/step; ~5 MiB double-buffered (int8 in/out)
_MAX_TILE_INTERP = 128 * 1024     # lanes/step; ~11 MiB double-buffered (f32)

# ------------------------------------------------------------------ tables ---
TRIANGLE_TABLE = np.array(
    [[-1, -1, -1, -1, -1, -1], [1, 0, 2, -1, -1, -1], [4, 0, 3, -1, -1, -1],
     [1, 4, 2, 1, 3, 4], [3, 1, 5, -1, -1, -1], [2, 3, 0, 2, 5, 3],
     [1, 4, 0, 1, 5, 4], [4, 2, 5, -1, -1, -1], [4, 5, 2, -1, -1, -1],
     [4, 1, 0, 4, 5, 1], [3, 2, 0, 3, 5, 2], [1, 3, 5, -1, -1, -1],
     [4, 1, 2, 4, 3, 1], [3, 0, 4, -1, -1, -1], [2, 0, 1, -1, -1, -1],
     [-1, -1, -1, -1, -1, -1]], dtype=np.int32)
NUM_TRIANGLES_TABLE = np.array([0, 1, 1, 2, 1, 2, 2, 1, 1, 2, 2, 1, 2, 1, 1, 0],
                               dtype=np.int32)
BASE_TET_EDGES = np.array([0, 1, 0, 2, 0, 3, 1, 2, 1, 3, 2, 3], dtype=np.int32)


def _round_up(n, m):
    return max(m, ((n + m - 1) // m) * m)


def _choose_tile(n, max_tile):
    """Lane-tile width and padded extent for `n` items.

    Aims for >= 2 grid steps (so a "parallel" axis can shard across v7x's two
    TensorCores) while capping the per-step tile at `max_tile` lanes.
    """
    n128 = _round_up(n, _LANE)
    if n128 <= _LANE:
        return _LANE, _LANE
    half = _round_up((n128 + 1) // 2, _LANE)
    tile = min(max_tile, half)
    return tile, _round_up(n128, tile)


def _vmem_limit_bytes(step_bytes):
    # double-buffered per-step footprint + slack; never below the 16 MiB v5e
    # scoped default, never above 48 MiB (headroom inside v7x's 64 MiB VMEM).
    return int(min(max(2 * step_bytes + (1 << 20), 16 << 20), 48 << 20))


# ----------------------------------------------------------- Pallas kernels ---
def _tet_index_kernel(occ_ref, tetidx_ref):
    # occ_ref: (4, T) int8 in {0,1} -> widen once, weighted sum, store as int8
    # (values 0..15) so the writeback is 1 B/tet instead of 4 B/tet.
    occ = occ_ref[...].astype(jnp.int32)
    code = occ[0:1] + 2 * occ[1:2] + 4 * occ[2:3] + 8 * occ[3:4]
    tetidx_ref[...] = code.astype(jnp.int8)


def tet_index(occ_t8):
    """occ_t8: (4, F) int8 in {0,1} -> tetindex (F,) int32 (bit k = corner k)."""
    F = occ_t8.shape[1]
    tile, Fp = _choose_tile(F, _MAX_TILE_TETIDX)
    occ_p = jnp.pad(occ_t8, ((0, 0), (0, Fp - F)))          # pad lanes with 0
    # TODO(synk): int8 tiles natively as (32,128); if profiling shows the
    # (4,tile) int8 block being sublane-padded/relaid-out, switch occ to int32.
    step_bytes = tile * (4 + 1)                              # int8 in + int8 out
    tetidx8 = pl.pallas_call(
        _tet_index_kernel,
        out_shape=jax.ShapeDtypeStruct((1, Fp), jnp.int8),
        grid=(Fp // tile,),
        in_specs=[pl.BlockSpec((4, tile), lambda i: (0, i))],
        out_specs=pl.BlockSpec((1, tile), lambda i: (0, i)),
        compiler_params=pltpu.CompilerParams(
            dimension_semantics=("parallel",),
            vmem_limit_bytes=_vmem_limit_bytes(step_bytes)),
    )(occ_p)
    return tetidx8[0, :F].astype(jnp.int32)


def _interp_kernel(pa_ref, pb_ref, sab_ref, out_ref):
    pa = pa_ref[...]                                        # (3, T) f32
    pb = pb_ref[...]                                        # (3, T) f32
    sab = sab_ref[...]                                      # (2, T) f32
    s0 = sab[0:1]
    s1 = sab[1:2]
    # exact reciprocal keeps reference numerics / gradient fidelity
    # (approx=True would shift verts by ~1e-3 rel; not worth it — mem-bound).
    inv = pl.reciprocal(s0 - s1, approx=False)
    out_ref[...] = pa * (-s1 * inv) + pb * (s0 * inv)


def interp_verts(pos_t, sdf_n, interp_v):
    """pos_t: (3, N) f32; sdf_n: (N,) f32; interp_v: (E, 2) int -> verts (E, 3)."""
    E = interp_v.shape[0]
    tile, Ep = _choose_tile(E, _MAX_TILE_INTERP)
    pad = Ep - E
    # pad the *index* vectors (with vertex 0, always valid) so the lane padding
    # is fused into the gathers instead of being a separate pad/concat pass.
    ia = jnp.pad(interp_v[:, 0], (0, pad))
    ib = jnp.pad(interp_v[:, 1], (0, pad))
    pa = jnp.take(pos_t, ia, axis=1).astype(jnp.float32)    # (3, Ep)
    pb = jnp.take(pos_t, ib, axis=1).astype(jnp.float32)    # (3, Ep)
    valid = (jnp.arange(Ep) < E)[None, :]
    # padded lanes get sdf (1, -1) so the denominator (s0 - s1) is never zero.
    s0 = jnp.where(valid, sdf_n[ia][None, :], 1.0)
    s1 = jnp.where(valid, sdf_n[ib][None, :], -1.0)
    sab = jnp.concatenate([s0, s1], axis=0).astype(jnp.float32)   # (2, Ep)

    step_bytes = tile * 4 * (3 + 3 + 2 + 3)                  # inputs + output
    out = pl.pallas_call(
        _interp_kernel,
        out_shape=jax.ShapeDtypeStruct((3, Ep), jnp.float32),
        grid=(Ep // tile,),
        in_specs=[pl.BlockSpec((3, tile), lambda i: (0, i)),
                  pl.BlockSpec((3, tile), lambda i: (0, i)),
                  pl.BlockSpec((2, tile), lambda i: (0, i))],
        out_specs=pl.BlockSpec((3, tile), lambda i: (0, i)),
        compiler_params=pltpu.CompilerParams(
            dimension_semantics=("parallel",),
            vmem_limit_bytes=_vmem_limit_bytes(step_bytes)),
    )(pa, pb, sab)
    return out[:, :E].T                                      # (E, 3)


# ------------------------------------------------------------- forward pass ---
def map_uv(faces, face_gidx, max_idx):
    N = int(np.ceil(np.sqrt((max_idx + 1) // 2)))
    tex = jnp.linspace(0.0, 1.0 - 1.0 / N, N, dtype=jnp.float32)
    tex_y, tex_x = jnp.meshgrid(tex, tex, indexing='ij')
    pad = 0.9 / N
    uvs = jnp.stack([tex_x, tex_y, tex_x + pad, tex_y,
                     tex_x + pad, tex_y + pad, tex_x, tex_y + pad],
                    axis=-1).reshape(-1, 2)

    def _idx(tet_idx, n):
        return (tet_idx // n) * n + tet_idx % n

    tet_idx = _idx(face_gidx // 2, N)
    tri_idx = face_gidx % 2
    uv_idx = jnp.stack([tet_idx * 4, tet_idx * 4 + tri_idx + 1,
                        tet_idx * 4 + tri_idx + 2], axis=-1).reshape(-1, 3)
    return uvs, uv_idx


def marching_tetrahedra(pos_nx3, sdf_n, tet_fx4):
    """Equivalent of MarchingTetrahedrons.forward (int32 indices instead of int64)."""
    triangle_table = jnp.asarray(TRIANGLE_TABLE)
    num_triangles_table = jnp.asarray(NUM_TRIANGLES_TABLE)
    base_tet_edges = jnp.asarray(BASE_TET_EDGES)

    occ_n = sdf_n > 0
    # transposed gather -> (4, F) directly; int8 shrinks the kernel input bytes
    occ_t8 = occ_n[tet_fx4.T].astype(jnp.int8)

    # hot path 1 (Pallas): per-tet occupancy code; valid_tets derived from it
    tetindex_all = tet_index(occ_t8)
    valid_tets = (tetindex_all != 0) & (tetindex_all != 15)

    # edges of the crossed tets, sorted (min, max)
    all_edges = tet_fx4[valid_tets][:, base_tet_edges].reshape(-1, 2)
    all_edges_sorted = jnp.stack([jnp.minimum(all_edges[:, 0], all_edges[:, 1]),
                                  jnp.maximum(all_edges[:, 0], all_edges[:, 1])],
                                 axis=-1)

    # TODO(synk): torch.unique / boolean compaction have data-dependent output
    # shapes with no static-shape Pallas equivalent; done eagerly in plain JAX
    # (not jitted).  This path dominates wall time for large tet grids.
    unique_edges, idx_map = jnp.unique(all_edges_sorted, axis=0, return_inverse=True)
    idx_map = idx_map.reshape(-1)

    mask_edges = occ_n[unique_edges.reshape(-1)].reshape(-1, 2).sum(-1) == 1
    mapping = jnp.where(mask_edges, jnp.cumsum(mask_edges.astype(jnp.int32)) - 1, -1)
    idx_map = mapping[idx_map]
    interp_v = unique_edges[mask_edges]                      # (E, 2)

    # hot path 2 (Pallas): differentiable edge interpolation
    pos_t = pos_nx3.T                                        # (3, N), one small pass
    verts = interp_verts(pos_t, sdf_n, interp_v)

    idx_map = idx_map.reshape(-1, 6)
    tetindex = tetindex_all[valid_tets]
    num_triangles = num_triangles_table[tetindex]

    m1 = num_triangles == 1
    m2 = num_triangles == 2
    faces1 = jnp.take_along_axis(
        idx_map[m1], triangle_table[tetindex[m1]][:, :3], axis=1).reshape(-1, 3)
    faces2 = jnp.take_along_axis(
        idx_map[m2], triangle_table[tetindex[m2]][:, :6], axis=1).reshape(-1, 3)
    faces = jnp.concatenate([faces1, faces2], axis=0)

    num_tets = tet_fx4.shape[0]
    tet_gidx = jnp.arange(num_tets, dtype=jnp.int32)[valid_tets]
    face_gidx = jnp.concatenate([
        tet_gidx[m1] * 2,
        jnp.stack([tet_gidx[m2] * 2, tet_gidx[m2] * 2 + 1], axis=-1).reshape(-1),
    ], axis=0)

    uvs, uv_idx = map_uv(faces, face_gidx, num_tets * 2)
    return verts, faces, uvs, uv_idx


# -------------------------------------------------------------------- setup ---
def build_tet_grid(res=4):
    """Regular grid in [0,1]^3, each cube split into 6 tets (Kuhn decomposition)."""
    lin = np.linspace(0.0, 1.0, res, dtype=np.float32)
    X, Y, Z = np.meshgrid(lin, lin, lin, indexing='ij')
    pos = np.stack([X, Y, Z], axis=-1).reshape(-1, 3)

    def vid(i, j, k):
        return (i * res + j) * res + k

    perms = [(0, 1, 2), (0, 2, 1), (1, 0, 2), (1, 2, 0), (2, 0, 1), (2, 1, 0)]
    tets = []
    for i in range(res - 1):
        for j in range(res - 1):
            for k in range(res - 1):
                for p in perms:
                    c = np.array([i, j, k])
                    vs = [vid(*c)]
                    for ax in p:
                        c = c.copy()
                        c[ax] += 1
                        vs.append(vid(*c))
                    tets.append(vs)
    return pos, np.array(tets, dtype=np.int32)


if __name__ == "__main__":
    key = jax.random.PRNGKey(0)
    pos_np, tet_np = build_tet_grid(res=4)          # 64 vertices, 162 tets
    pos_nx3 = jnp.asarray(pos_np, dtype=jnp.float32)
    tet_fx4 = jnp.asarray(tet_np, dtype=jnp.int32)

    # sphere SDF + small deterministic noise -> guarantees surface crossings
    k0, k1, k2 = jax.random.split(key, 3)
    noise = 0.02 * jax.random.normal(k0, (pos_nx3.shape[0],), dtype=jnp.float32)
    sdf_n = 0.35 - jnp.linalg.norm(pos_nx3 - 0.5, axis=-1) + noise

    verts, faces, uvs, uv_idx = marching_tetrahedra(pos_nx3, sdf_n, tet_fx4)
    jax.block_until_ready((verts, faces, uvs, uv_idx))

    # ---- silent sanity checks of the Pallas hot paths vs pure numpy refs ----
    occ_np = np.asarray(sdf_n) > 0
    ti_pl = np.asarray(tet_index(jnp.asarray(occ_np[tet_np.T].astype(np.int8))))
    ti_ref = (occ_np[tet_np].astype(np.int32) * np.array([1, 2, 4, 8])).sum(-1)
    assert np.array_equal(ti_pl, ti_ref)

    pos_chk = jax.random.uniform(k1, (16, 3), dtype=jnp.float32)
    mag = jax.random.uniform(k2, (16,), dtype=jnp.float32) + 0.1
    sdf_chk = mag.at[8:].multiply(-1.0)             # first 8 positive, last 8 negative
    iv_chk = jnp.stack([jnp.arange(8, dtype=jnp.int32),
                        jnp.arange(8, 16, dtype=jnp.int32)], axis=1)
    v_pl = np.asarray(interp_verts(pos_chk.T, sdf_chk, iv_chk))
    p_np, s_np = np.asarray(pos_chk), np.asarray(sdf_chk)
    s0, s1 = s_np[:8, None], s_np[8:, None]
    v_ref = p_np[:8] * (-s1 / (s0 - s1)) + p_np[8:] * (s0 / (s0 - s1))
    np.testing.assert_allclose(v_pl, v_ref, rtol=1e-5, atol=1e-5)

    assert np.all(np.isfinite(np.asarray(verts)))
    assert faces.shape[0] == uv_idx.shape[0] and faces.shape[1] == 3
    assert faces.shape[0] > 0

    print("KERNEL_OK")
</pallas_src>

<mosaic_0001>
module attributes {stable_mosaic.version = 11 : i64} {
  func.func @_tet_index_kernel(%arg0: i32, %arg1: memref<4x128xi8, #tpu.memory_space<vmem>>, %arg2: memref<1x128xi8, #tpu.memory_space<vmem>>) attributes {dimension_semantics = [#tpu.dimension_semantics<parallel>], iteration_bounds = array<i64: 2>, scalar_prefetch = 0 : i64, scratch_operands = 0 : i64, tpu.core_type = #tpu.core_type<tc>, window_params = [{transform_indices = @transform_0, window_bounds = array<i64: 4, 128>}, {transform_indices = @transform_1, window_bounds = array<i64: 1, 128>}]} {
    %c0 = arith.constant 0 : index
    %c0_0 = arith.constant 0 : index
    %0 = vector.load %arg1[%c0, %c0_0] : memref<4x128xi8, #tpu.memory_space<vmem>>, vector<4x128xi8>
    %1 = arith.extsi %0 : vector<4x128xi8> to vector<4x128xi32>
    %2 = vector.extract_strided_slice %1 {offsets = [0, 0], sizes = [1, 128], strides = [1, 1]} : vector<4x128xi32> to vector<1x128xi32>
    %3 = vector.extract_strided_slice %1 {offsets = [1, 0], sizes = [1, 128], strides = [1, 1]} : vector<4x128xi32> to vector<1x128xi32>
    %c2_i32 = arith.constant 2 : i32
    %4 = vector.broadcast %c2_i32 : i32 to vector<1x128xi32>
    %5 = arith.muli %4, %3 : vector<1x128xi32>
    %6 = arith.addi %2, %5 : vector<1x128xi32>
    %7 = vector.extract_strided_slice %1 {offsets = [2, 0], sizes = [1, 128], strides = [1, 1]} : vector<4x128xi32> to vector<1x128xi32>
    %c4_i32 = arith.constant 4 : i32
    %8 = vector.broadcast %c4_i32 : i32 to vector<1x128xi32>
    %9 = arith.muli %8, %7 : vector<1x128xi32>
    %10 = arith.addi %6, %9 : vector<1x128xi32>
    %11 = vector.extract_strided_slice %1 {offsets = [3, 0], sizes = [1, 128], strides = [1, 1]} : vector<4x128xi32> to vector<1x128xi32>
    %c8_i32 = arith.constant 8 : i32
    %12 = vector.broadcast %c8_i32 : i32 to vector<1x128xi32>
    %13 = arith.muli %12, %11 : vector<1x128xi32>
    %14 = arith.addi %10, %13 : vector<1x128xi32>
    %15 = arith.trunci %14 : vector<1x128xi32> to vector<1x128xi8>
    %c0_1 = arith.constant 0 : index
    %c0_2 = arith.constant 0 : index
    %16 = vector.load %arg2[%c0_1, %c0_2] : memref<1x128xi8, #tpu.memory_space<vmem>>, vector<1x128xi8>
    tpu.vector_store %arg2[%c0_1, %c0_2], %15 {strides = array<i32>} : memref<1x128xi8, #tpu.memory_space<vmem>>, vector<1x128xi8>,
    return
  }
  func.func @transform_0(%arg0: i32) -> (i32, i32) {
    %c0_i32 = arith.constant 0 : i32
    %c0_i32_0 = arith.constant 0 : i32
    return %c0_i32, %arg0 : i32, i32
  }
  func.func @transform_1(%arg0: i32) -> (i32, i32) {
    %c0_i32 = arith.constant 0 : i32
    %c0_i32_0 = arith.constant 0 : i32
    return %c0_i32, %arg0 : i32, i32
  }
}

</mosaic_0001>

<llo_original>
// kernel: tpu_custom_call.1
$region0: #{tpu_custom_call.1}
  #allocation0 [shape = 'u32[]', space=smem, size = 0x4, offset = 0x4, fixed_abs, tag = 'smem constant byte address 0x4 - core index']
  #allocation1 [shape = 'u32[144,128]{1,0:T(1,128)}', space=vmem, size = 0x12000, scoped, tag = 'internal scratch']
  %s0 = inlined_call_operand.hbm [shape: s8[4,256], index: 0, kind: input, shape index: {}]
  %s1 = inlined_call_operand.hbm [shape: s8[1,256], index: 1, kind: output, shape index: {}]
  %s2 = sld [smem:[#allocation0]]
  $region41: #{tpu_custom_call.1} parent=0
    _
  %s4 = ssub.s32 1, %s2
  %s5 = scalar_select 0, %s4, %s2
  $region1: #{tpu_custom_call.1} parent=0
    #allocation2 [shape = 'u8[1024]{0}', space=vmem, size = 0x400, scoped, tag = 'input window, operand 0']
    #allocation3 [shape = 's32[2]{0}', space=sflag, size = 0x8, scoped, tag = 'scoped memory for tpu_custom_call.1']
    #allocation4 [shape = 's32[2]{0}', space=sflag, size = 0x8, scoped, tag = 'scoped memory for tpu_custom_call.1']
    #allocation5 [shape = 'u8[1024]{0}', space=vmem, size = 0x400, scoped, tag = 'output window, operand 0']
    %6 = vsyncpa [#allocation3], 0
    %s7 = scalar_lea.sflag [#allocation3], 1
    %8 = vsyncpa %s7, 0
    %9 = vsyncpa [#allocation4], 0
    %s10 = scalar_lea.sflag [#allocation4], 1
    %11 = vsyncpa %s10, 0
    loop: start=0, step=1, limit=4
    $region2: #{tpu_custom_call.1} parent=1 // loop_pre_header
      _
    $region3: #{tpu_custom_call.1} parent=1 // loop_header
      %s13 = sphi 0, %s17
      %p14 = scmp.ge.s32.totalorder %s13, 4
      %s23 = sphi 0, %s25
      %s26 = sphi 0, %s23
      %s27 = sphi 0, %s26
      %s43 = sphi 0, %s27
      %s49 = sphi 0, %s51
      %s52 = sphi 0, %s49
      %s53 = sphi 0, %s52
      %s69 = sphi 0, %s53
    $region4: #{tpu_custom_call.1} parent=1 // loop_header_branch
      %16 = sbr.rel (%p14) target = $region8
    $region5: #{tpu_custom_call.1} parent=1 // loop_body
      %s18 = ssub.s32 %s13, 1
      %s19 = ssub.s32 %s13, 2
      %s20 = sadd.s32 %s13, 1
      %s21 = ssub.s32 %s13, %s20
      %p22 = scmp.eq.s32.totalorder %s21, 0
      %s24 = sadd.s32 %s23, 1
      %s25 = scalar_select %p22, %s23, %s24
      %p28 = pneg %p22
      %p29 = scmp.eq.s32.totalorder %s13, 1
      %p30 = por %p28, %p29
      %p31 = scmp.ne.s32.totalorder %s23, %s26
      %p32 = scmp.eq.s32.totalorder %s13, 0
      %p33 = por %p31, %p32
      %p34 = scmp.ne.s32.totalorder %s23, %s26
      %p35 = scmp.eq.s32.totalorder %s18, 1
      %p36 = por %p34, %p35
      %p37 = scmp.ne.s32.totalorder %s26, %s27
      %p38 = scmp.eq.s32.totalorder %s18, 0
      %p39 = por %p37, %p38
      %p40 = scmp.ne.s32.totalorder %s26, %s27
      %p41 = scmp.eq.s32.totalorder %s19, 1
      %p42 = por %p40, %p41
      %p44 = scmp.ne.s32.totalorder %s27, %s43
      %p45 = scmp.eq.s32.totalorder %s19, 0
      %p46 = por %p44, %p45
      %s47 = ssub.s32 %s13, %s20
      %p48 = scmp.eq.s32.totalorder %s47, 0
      %s50 = sadd.s32 %s49, 1
      %s51 = scalar_select %p48, %s49, %s50
      %p54 = pneg %p48
      %p55 = scmp.eq.s32.totalorder %s13, 1
      %p56 = por %p54, %p55
      %p57 = scmp.ne.s32.totalorder %s49, %s52
      %p58 = scmp.eq.s32.totalorder %s13, 0
      %p59 = por %p57, %p58
      %p60 = scmp.ne.s32.totalorder %s49, %s52
      %p61 = scmp.eq.s32.totalorder %s18, 1
      %p62 = por %p60, %p61
      %p63 = scmp.ne.s32.totalorder %s52, %s53
      %p64 = scmp.eq.s32.totalorder %s18, 0
      %p65 = por %p63, %p64
      %p66 = scmp.ne.s32.totalorder %s52, %s53
      %p67 = scmp.eq.s32.totalorder %s19, 1
      %p68 = por %p66, %p67
      %p70 = scmp.ne.s32.totalorder %s53, %s69
      %p71 = scmp.eq.s32.totalorder %s19, 0
      %p72 = por %p70, %p71
      %p73 = scmp.le.s32.totalorder 1, %s13
      %p74 = scmp.lt.s32.totalorder %s13, 3
      %p75 = pnand %p73, %p74
      %p76 = pneg %p75
      // Predicated region
      $region9: #{tpu_custom_call.1} parent=5 // pred_check
        _
      $region10: #{tpu_custom_call.1} parent=5 // pred_check_branch
        %78 = sbr.rel (%p75) target = $region12
      $region11: #{tpu_custom_call.1} parent=5 // pred_region
        %s79 = ssub.s32 %s13, 1
      $region12: #{tpu_custom_call.1} parent=5 // pred_fallthru
        _
      %p80 = scmp.lt.s32.totalorder %s13, 2
      // Predicated region
      $region13: #{tpu_custom_call.1} parent=5 // pred_check
        %p81 = pneg %p80
      $region14: #{tpu_custom_call.1} parent=5 // pred_check_branch
        %83 = sbr.rel (%p81) target = $region16
      $region15: #{tpu_custom_call.1} parent=5 // pred_region
        // Predicated region
        $region17: #{tpu_custom_call.1} parent=15 // pred_check
          %p84 = pneg %p33
        $region18: #{tpu_custom_call.1} parent=15 // pred_check_branch
          %86 = sbr.rel (%p84) target = $region20
        $region19: #{tpu_custom_call.1} parent=15 // pred_region
          %s87 = sand.u32 %s23, 1
          %s88 = scalar_lea.sflag [#allocation3], %s87
          %s89 = sand.u32 %s23, 1
          %s90 = scalar_lea.vmem [#allocation2], %s89
          %s92 = ssub.s32 16, 16
          %93 = vsyncadd %s88, %s92
          %s94 = smul.addr %s13, 16
          %s95 = scalar_lea.hbm %s0, %s94
          %s97 = sshll.u32 %s90, 4
          %s98 = int_to_ptr.vmem [resolvable:$true] %s97
          %100 = dma.hbm_to_vmem [thread:$0]  %s95, 16, %s98, %s88
        $region20: #{tpu_custom_call.1} parent=15 // pred_fallthru
          _
      $region16: #{tpu_custom_call.1} parent=5 // pred_fallthru
        _
      %p101 = scmp.le.s32.totalorder 1, %s13
      %p102 = scmp.lt.s32.totalorder %s13, 3
      %p103 = pnand %p101, %p102
      %p104 = pneg %p103
      // Predicated region
      $region21: #{tpu_custom_call.1} parent=5 // pred_check
        _
      $region22: #{tpu_custom_call.1} parent=5 // pred_check_branch
        %106 = sbr.rel (%p103) target = $region24
      $region23: #{tpu_custom_call.1} parent=5 // pred_region
        %s107 = ssub.s32 %s13, 1
        %s108 = sand.u32 %s26, 1
        %s109 = scalar_lea.sflag [#allocation3], %s108
        %s110 = sand.u32 %s26, 1
        %s111 = scalar_lea.vmem [#allocation2], %s110
        // Predicated region
        $region25: #{tpu_custom_call.1} parent=23 // pred_check
          %p112 = pneg %p39
        $region26: #{tpu_custom_call.1} parent=23 // pred_check_branch
          %114 = sbr.rel (%p112) target = $region28
        $region27: #{tpu_custom_call.1} parent=23 // pred_region
          %115 = dma.done %s109, 16
        $region28: #{tpu_custom_call.1} parent=23 // pred_fallthru
          _
        %s116 = sand.u32 %s26, 1
        %s117 = scalar_lea.sflag [#allocation3], %s116
        %s118 = sand.u32 %s26, 1
        %s119 = scalar_lea.vmem [#allocation2], %s118
        %p120 = pneg %p39
        %p121 = pneg %p36
        %p122 = pneg %p65
        %p123 = pneg %p62
        %s124 = sand.u32 %s52, 1
        %s125 = scalar_lea.sflag [#allocation4], %s124
        %s126 = sand.u32 %s52, 1
        %s127 = scalar_lea.vmem [#allocation5], %s126
        %v128 = vld [vmem:[%s111] sm:$0x1]
        %v129 = vunpack.c.0.s8 %v128
        %v130 = vmul.u32 %v129, 2
        %v131 = vrot.slane %v130, 5
        %v132 = vrot.slane %v131, 4
        %v133 = vadd.s32 %v129, %v132
        %v134 = vmul.u32 %v129, 4
        %v135 = vrot.slane %v134, 6
        %v136 = vrot.slane %v135, 4
        %v137 = vadd.s32 %v133, %v136
        %v138 = vmul.u32 %v129, 8
        %v139 = vrot.slane %v138, 7
        %v140 = vrot.slane %v139, 4
        %v141 = vadd.s32 %v137, %v140
        %v142 = vpack.c.b16 %v141, %v141
        %v143 = vpack.c.b8 %v142, %v142
        %vm144 = vcmask 1040384
        %vm145 = vsmask.f32 0
        %vm146 = vmand %vm144, %vm145
        %v147 = vld [vmem:[%s127] sm:$0x1]
        %v148 = vsel %vm146, %v143, %v147
        %149 = vst [vmem:[%s127] sm:$0x1] %v148
        %s150 = sand.u32 %s52, 1
        %s151 = scalar_lea.sflag [#allocation4], %s150
        %s152 = sand.u32 %s52, 1
        %s153 = scalar_lea.vmem [#allocation5], %s152
        // Predicated region
        $region29: #{tpu_custom_call.1} parent=23 // pred_check
          %p154 = pneg %p62
        $region30: #{tpu_custom_call.1} parent=23 // pred_check_branch
          %156 = sbr.rel (%p154) target = $region32
        $region31: #{tpu_custom_call.1} parent=23 // pred_region
          %s158 = ssub.s32 16, 16
          %159 = vsyncadd %s151, %s158
          %s160 = smul.addr %s18, 16
          %s161 = scalar_lea.hbm %s1, %s160
          %s163 = sshll.u32 %s153, 4
          %s164 = int_to_ptr.vmem [resolvable:$true] %s163
          %166 = dma.vmem_to_hbm [thread:$0]  %s164, 16, %s161, %s151
        $region32: #{tpu_custom_call.1} parent=23 // pred_fallthru
          _
      $region24: #{tpu_custom_call.1} parent=5 // pred_fallthru
        _
      %p167 = scmp.le.s32.totalorder 2, %s13
      // Predicated region
      $region33: #{tpu_custom_call.1} parent=5 // pred_check
        %p168 = pneg %p167
      $region34: #{tpu_custom_call.1} parent=5 // pred_check_branch
        %170 = sbr.rel (%p168) target = $region36
      $region35: #{tpu_custom_call.1} parent=5 // pred_region
        %s171 = ssub.s32 %s13, 2
        // Predicated region
        $region37: #{tpu_custom_call.1} parent=35 // pred_check
          %p172 = pneg %p68
        $region38: #{tpu_custom_call.1} parent=35 // pred_check_branch
          %174 = sbr.rel (%p172) target = $region40
        $region39: #{tpu_custom_call.1} parent=35 // pred_region
          %s175 = sand.u32 %s53, 1
          %s176 = scalar_lea.sflag [#allocation4], %s175
          %s177 = sand.u32 %s53, 1
          %s178 = scalar_lea.vmem [#allocation5], %s177
          %179 = dma.done %s176, 16
        $region40: #{tpu_custom_call.1} parent=35 // pred_fallthru
          _
      $region36: #{tpu_custom_call.1} parent=5 // pred_fallthru
        _
    $region6: #{tpu_custom_call.1} parent=1 // loop_footer
      %s17 = sadd.s32 1, %s13
    $region7: #{tpu_custom_call.1} parent=1 // loop_footer_branch
      %12 = sbr.rel target = $region3
    $region8: #{tpu_custom_call.1} parent=1 // loop_exit
      _
    %180 = vsyncpa [#allocation3], 1
    %s181 = scalar_lea.sflag [#allocation3], 1
    %182 = vsyncpa %s181, 1
    %183 = vsyncpa [#allocation4], 1
    %s184 = scalar_lea.sflag [#allocation4], 1
    %185 = vsyncpa %s184, 1

</llo_original>
